<compile_context>
chip_gen: v5e
topology: v5e:2x2
jax: 0.10.0
libtpu: 0.0.40
codegen_flags: <defaults>
</compile_context>

<pallas_src>
import jax
import jax.numpy as jnp
from jax.experimental import pallas as pl
from jax.experimental.pallas import tpu as pltpu

_LANE = 128
_MAX_T_TILE = 2048  # VMEM budget is the real bound; this just caps per-step latency.


def _cdiv(a, b):
    return (a + b - 1) // b


def _round_up(n, m):
    return ((n + m - 1) // m) * m


def _vmem_budgets():
    """Generation-aware (physical_vmem, block_budget, scoped_limit) in bytes.

    v5e/v6e: 128 MiB physical VMEM -> big blocks.  v7x: 64 MiB -> conservative
    budgets so double-buffering (DMA/compute overlap) always fits.
    """
    phys = 64 * 1024 * 1024  # conservative default (v7x)
    try:
        info = pltpu.get_tpu_info()
        phys = int(getattr(info, "vmem_capacity_bytes", phys) or phys)
    except Exception:
        pass
    if phys >= 100 * 1024 * 1024:  # v5e / v6e (128 MiB)
        return phys, 48 * 1024 * 1024, 96 * 1024 * 1024
    return phys, 16 * 1024 * 1024, 32 * 1024 * 1024  # v7x (64 MiB)


def _pos_enc_kernel(x_ref, pe_ref, o_ref):
    # Broadcasted elementwise add; cast both operands to the output dtype so
    # semantics match PyTorch's `x + pos_emb` type promotion (or the caller's
    # opt-in narrow-store dtype).
    o_ref[...] = x_ref[...].astype(o_ref.dtype) + pe_ref[...].astype(o_ref.dtype)


def learnable_positional_encoding(x, positional_embedding, *, out_dtype=None):
    """x: (B, C, T); positional_embedding: (1, C, max_len). Returns x + pe[:, :, :T]."""
    B, C, T = x.shape
    one, C_pe, max_len = positional_embedding.shape
    assert one == 1 and C_pe == C and T <= max_len

    # Default matches torch promotion; pass out_dtype=x.dtype (opt-in) to halve
    # store bytes when x is bf16 and the learnable embedding is f32.
    if out_dtype is None:
        out_dtype = jnp.result_type(x.dtype, positional_embedding.dtype)
    x_isz = jnp.dtype(x.dtype).itemsize
    pe_isz = jnp.dtype(positional_embedding.dtype).itemsize
    o_isz = jnp.dtype(out_dtype).itemsize

    phys_vmem, block_budget, vmem_limit = _vmem_budgets()
    t_needed = _round_up(T, _LANE)

    # Preferred layout: fold the whole batch into each block (pe fetched once
    # per T-tile; B x more bytes per grid step).  All blocks double-buffered.
    folded_bytes_per_t = 2 * (B * C * (x_isz + o_isz) + C * pe_isz)

    if folded_bytes_per_t * _LANE <= block_budget:
        t_by_vmem = (block_budget // folded_bytes_per_t) // _LANE * _LANE
        t_tile = max(_LANE, min(t_needed, t_by_vmem, _MAX_T_TILE))
        # v7x megacore: guarantee >=2 steps on the 'parallel' axis so both
        # TensorCores get work; costs one extra tiny step on single-TC chips.
        if _cdiv(T, t_tile) < 2 and T > _LANE:
            t_tile = _round_up(_cdiv(T, 2), _LANE)
        grid = (_cdiv(T, t_tile),)
        in_specs = [
            pl.BlockSpec((B, C, t_tile), lambda t: (0, 0, t)),               # x
            pl.BlockSpec((pl.Squeezed(), C, t_tile), lambda t: (0, 0, t)),   # pe (broadcast over B)
        ]
        out_specs = pl.BlockSpec((B, C, t_tile), lambda t: (0, 0, t))
        dim_sem = ("parallel",)
        block_bytes = 2 * t_tile * (B * C * (x_isz + o_isz) + C * pe_isz)
    else:
        # Very large B*C: tile per batch element.  Batch is the innermost grid
        # axis so the pe block index is unchanged between consecutive steps
        # (not re-fetched); pe is single-buffered to free VMEM for a bigger T tile.
        per_b_bytes_per_t = 2 * C * (x_isz + o_isz) + C * pe_isz
        t_by_vmem = (block_budget // per_b_bytes_per_t) // _LANE * _LANE
        t_tile = max(_LANE, min(t_needed, t_by_vmem, _MAX_T_TILE))
        grid = (_cdiv(T, t_tile), B)
        in_specs = [
            pl.BlockSpec((pl.Squeezed(), C, t_tile), lambda t, b: (b, 0, t)),  # x
            pl.BlockSpec((pl.Squeezed(), C, t_tile), lambda t, b: (0, 0, t),
                         pipeline_mode=pl.Buffered(1)),                        # pe
        ]
        out_specs = pl.BlockSpec((pl.Squeezed(), C, t_tile), lambda t, b: (b, 0, t))
        dim_sem = ("parallel", "parallel")
        block_bytes = t_tile * (2 * C * (x_isz + o_isz) + C * pe_isz)

    # Never request less scoped VMEM than the chosen blocks actually need
    # (guards the huge-C fallback where even a 128-lane tile overshoots budget).
    vmem_limit = int(min(max(vmem_limit, block_bytes + (2 << 20)), phys_vmem))

    cost = pl.CostEstimate(
        flops=B * C * T,
        transcendentals=0,
        bytes_accessed=B * C * T * (x_isz + o_isz) + C * T * pe_isz,
    )

    # TODO(synk): for sub-32-bit dtypes with C below the sublane packing factor,
    # fold (B, C) into rows of a 2-D (B*C, T) view to avoid underfilled vregs.
    # NOTE: the biggest possible win is fusing this add into an adjacent kernel
    # to avoid a dedicated HBM round trip over x; out of scope for a standalone op.
    return pl.pallas_call(
        _pos_enc_kernel,
        out_shape=jax.ShapeDtypeStruct((B, C, T), out_dtype),
        grid_spec=pl.GridSpec(grid=grid, in_specs=in_specs, out_specs=out_specs),
        compiler_params=pltpu.CompilerParams(
            dimension_semantics=dim_sem,
            vmem_limit_bytes=vmem_limit,
        ),
        cost_estimate=cost,
    )(x, positional_embedding)


if __name__ == "__main__":
    key = jax.random.PRNGKey(0)
    k_x, k_pe, k_x2 = jax.random.split(key, 3)

    B, C, max_len = 2, 8, 2048
    # Deterministic "learnable" parameter (shape from __init__: (1, channels, max_len)).
    positional_embedding = jax.random.normal(k_pe, (1, C, max_len), dtype=jnp.float32)

    # Main check (T a multiple of 128; exercises the >=2-step megacore split).
    T = 256
    x = jax.random.normal(k_x, (B, C, T), dtype=jnp.float32)
    out = jax.block_until_ready(learnable_positional_encoding(x, positional_embedding))
    ref = x + positional_embedding[:, :, :T]
    assert out.shape == ref.shape and out.dtype == ref.dtype
    assert jnp.allclose(out, ref, atol=1e-6, rtol=1e-6)

    # Tail check (T not a multiple of 128; exercises the padded final block).
    T2 = 200
    x2 = jax.random.normal(k_x2, (B, C, T2), dtype=jnp.float32)
    out2 = jax.block_until_ready(learnable_positional_encoding(x2, positional_embedding))
    ref2 = x2 + positional_embedding[:, :, :T2]
    assert out2.shape == ref2.shape and out2.dtype == ref2.dtype
    assert jnp.allclose(out2, ref2, atol=1e-6, rtol=1e-6)

    print("KERNEL_OK")
</pallas_src>

<mosaic_0001>
module attributes {stable_mosaic.version = 11 : i64} {
  func.func @_pos_enc_kernel(%arg0: i32, %arg1: memref<2x8x128xf32, #tpu.memory_space<vmem>>, %arg2: memref<1x8x128xf32, #tpu.memory_space<vmem>>, %arg3: memref<2x8x128xf32, #tpu.memory_space<vmem>>) attributes {dimension_semantics = [#tpu.dimension_semantics<parallel>], iteration_bounds = array<i64: 2>, scalar_prefetch = 0 : i64, scratch_operands = 0 : i64, tpu.core_type = #tpu.core_type<tc>, window_params = [{transform_indices = @transform_0, window_bounds = array<i64: 2, 8, 128>}, {transform_indices = @transform_1, window_bounds = array<i64: 1, 8, 128>}, {transform_indices = @transform_2, window_bounds = array<i64: 2, 8, 128>}]} {
    %c0 = arith.constant 0 : index
    %c0_0 = arith.constant 0 : index
    %c0_1 = arith.constant 0 : index
    %0 = vector.load %arg1[%c0, %c0_0, %c0_1] : memref<2x8x128xf32, #tpu.memory_space<vmem>>, vector<2x8x128xf32>
    %c0_2 = arith.constant 0 : index
    %c0_3 = arith.constant 0 : index
    %c0_4 = arith.constant 0 : index
    %1 = vector.load %arg2[%c0_2, %c0_3, %c0_4] : memref<1x8x128xf32, #tpu.memory_space<vmem>>, vector<1x8x128xf32>
    %2 = vector.shape_cast %1 : vector<1x8x128xf32> to vector<8x128xf32>
    %3 = vector.shape_cast %2 : vector<8x128xf32> to vector<1x8x128xf32>
    %4 = vector.broadcast %3 : vector<1x8x128xf32> to vector<2x8x128xf32>
    %5 = arith.addf %0, %4 : vector<2x8x128xf32>
    %c0_5 = arith.constant 0 : index
    %c0_6 = arith.constant 0 : index
    %c0_7 = arith.constant 0 : index
    %6 = vector.load %arg3[%c0_5, %c0_6, %c0_7] : memref<2x8x128xf32, #tpu.memory_space<vmem>>, vector<2x8x128xf32>
    tpu.vector_store %arg3[%c0_5, %c0_6, %c0_7], %5 {strides = array<i32>} : memref<2x8x128xf32, #tpu.memory_space<vmem>>, vector<2x8x128xf32>,
    return
  }
  func.func @transform_0(%arg0: i32) -> (i32, i32, i32) {
    %c0_i32 = arith.constant 0 : i32
    %c0_i32_0 = arith.constant 0 : i32
    %c0_i32_1 = arith.constant 0 : i32
    return %c0_i32, %c0_i32_0, %arg0 : i32, i32, i32
  }
  func.func @transform_1(%arg0: i32) -> (i32, i32, i32) {
    %c0_i32 = arith.constant 0 : i32
    %c0_i32_0 = arith.constant 0 : i32
    %c0_i32_1 = arith.constant 0 : i32
    return %c0_i32, %c0_i32_0, %arg0 : i32, i32, i32
  }
  func.func @transform_2(%arg0: i32) -> (i32, i32, i32) {
    %c0_i32 = arith.constant 0 : i32
    %c0_i32_0 = arith.constant 0 : i32
    %c0_i32_1 = arith.constant 0 : i32
    return %c0_i32, %c0_i32_0, %arg0 : i32, i32, i32
  }
}

</mosaic_0001>

<llo_original>
// kernel: tpu_custom_call.1
$region0: #{tpu_custom_call.1}
  #allocation0 [shape = 'u32[]', space=smem, size = 0x4, offset = 0x4, fixed_abs, tag = 'smem constant byte address 0x4 - core index']
  #allocation1 [shape = 'u32[72,128]{1,0:T(1,128)}', space=vmem, size = 0x9000, scoped, tag = 'internal scratch']
  %s0 = inlined_call_operand.hbm [shape: f32[2,8,256], index: 0, kind: input, shape index: {}]
  %s1 = inlined_call_operand.hbm [shape: f32[1,8,2048], index: 1, kind: input, shape index: {}]
  %s2 = inlined_call_operand.hbm [shape: f32[2,8,256], index: 2, kind: output, shape index: {}]
  %s3 = sld [smem:[#allocation0]]
  $region49: #{tpu_custom_call.1} parent=0
    _
  %s5 = ssub.s32 1, %s3
  %s6 = scalar_select 0, %s5, %s3
  $region1: #{tpu_custom_call.1} parent=0
    #allocation2 [shape = 'u8[16384]{0}', space=vmem, size = 0x4000, scoped, tag = 'input window, operand 0']
    #allocation3 [shape = 's32[2]{0}', space=sflag, size = 0x8, scoped, tag = 'scoped memory for tpu_custom_call.1']
    #allocation4 [shape = 's32[2]{0}', space=sflag, size = 0x8, scoped, tag = 'scoped memory for tpu_custom_call.1']
    #allocation5 [shape = 'u8[8192]{0}', space=vmem, size = 0x2000, scoped, tag = 'input window, operand 1']
    #allocation6 [shape = 's32[2]{0}', space=sflag, size = 0x8, scoped, tag = 'scoped memory for tpu_custom_call.1']
    #allocation7 [shape = 'u8[16384]{0}', space=vmem, size = 0x4000, scoped, tag = 'output window, operand 0']
    %7 = vsyncpa [#allocation3], 0
    %s8 = scalar_lea.sflag [#allocation3], 1
    %9 = vsyncpa %s8, 0
    %10 = vsyncpa [#allocation6], 0
    %s11 = scalar_lea.sflag [#allocation6], 1
    %12 = vsyncpa %s11, 0
    %13 = vsyncpa [#allocation4], 0
    %s14 = scalar_lea.sflag [#allocation4], 1
    %15 = vsyncpa %s14, 0
    loop: start=0, step=1, limit=4
    $region2: #{tpu_custom_call.1} parent=1 // loop_pre_header
      _
    $region3: #{tpu_custom_call.1} parent=1 // loop_header
      %s17 = sphi 0, %s21
      %p18 = scmp.ge.s32.totalorder %s17, 4
      %s27 = sphi 0, %s29
      %s30 = sphi 0, %s27
      %s31 = sphi 0, %s30
      %s47 = sphi 0, %s31
      %s53 = sphi 0, %s55
      %s56 = sphi 0, %s53
      %s57 = sphi 0, %s56
      %s73 = sphi 0, %s57
      %s79 = sphi 0, %s81
      %s82 = sphi 0, %s79
      %s83 = sphi 0, %s82
      %s99 = sphi 0, %s83
    $region4: #{tpu_custom_call.1} parent=1 // loop_header_branch
      %20 = sbr.rel (%p18) target = $region8
    $region5: #{tpu_custom_call.1} parent=1 // loop_body
      %s22 = ssub.s32 %s17, 1
      %s23 = ssub.s32 %s17, 2
      %s24 = sadd.s32 %s17, 1
      %s25 = ssub.s32 %s17, %s24
      %p26 = scmp.eq.s32.totalorder %s25, 0
      %s28 = sadd.s32 %s27, 1
      %s29 = scalar_select %p26, %s27, %s28
      %p32 = pneg %p26
      %p33 = scmp.eq.s32.totalorder %s17, 1
      %p34 = por %p32, %p33
      %p35 = scmp.ne.s32.totalorder %s27, %s30
      %p36 = scmp.eq.s32.totalorder %s17, 0
      %p37 = por %p35, %p36
      %p38 = scmp.ne.s32.totalorder %s27, %s30
      %p39 = scmp.eq.s32.totalorder %s22, 1
      %p40 = por %p38, %p39
      %p41 = scmp.ne.s32.totalorder %s30, %s31
      %p42 = scmp.eq.s32.totalorder %s22, 0
      %p43 = por %p41, %p42
      %p44 = scmp.ne.s32.totalorder %s30, %s31
      %p45 = scmp.eq.s32.totalorder %s23, 1
      %p46 = por %p44, %p45
      %p48 = scmp.ne.s32.totalorder %s31, %s47
      %p49 = scmp.eq.s32.totalorder %s23, 0
      %p50 = por %p48, %p49
      %s51 = ssub.s32 %s17, %s24
      %p52 = scmp.eq.s32.totalorder %s51, 0
      %s54 = sadd.s32 %s53, 1
      %s55 = scalar_select %p52, %s53, %s54
      %p58 = pneg %p52
      %p59 = scmp.eq.s32.totalorder %s17, 1
      %p60 = por %p58, %p59
      %p61 = scmp.ne.s32.totalorder %s53, %s56
      %p62 = scmp.eq.s32.totalorder %s17, 0
      %p63 = por %p61, %p62
      %p64 = scmp.ne.s32.totalorder %s53, %s56
      %p65 = scmp.eq.s32.totalorder %s22, 1
      %p66 = por %p64, %p65
      %p67 = scmp.ne.s32.totalorder %s56, %s57
      %p68 = scmp.eq.s32.totalorder %s22, 0
      %p69 = por %p67, %p68
      %p70 = scmp.ne.s32.totalorder %s56, %s57
      %p71 = scmp.eq.s32.totalorder %s23, 1
      %p72 = por %p70, %p71
      %p74 = scmp.ne.s32.totalorder %s57, %s73
      %p75 = scmp.eq.s32.totalorder %s23, 0
      %p76 = por %p74, %p75
      %s77 = ssub.s32 %s17, %s24
      %p78 = scmp.eq.s32.totalorder %s77, 0
      %s80 = sadd.s32 %s79, 1
      %s81 = scalar_select %p78, %s79, %s80
      %p84 = pneg %p78
      %p85 = scmp.eq.s32.totalorder %s17, 1
      %p86 = por %p84, %p85
      %p87 = scmp.ne.s32.totalorder %s79, %s82
      %p88 = scmp.eq.s32.totalorder %s17, 0
      %p89 = por %p87, %p88
      %p90 = scmp.ne.s32.totalorder %s79, %s82
      %p91 = scmp.eq.s32.totalorder %s22, 1
      %p92 = por %p90, %p91
      %p93 = scmp.ne.s32.totalorder %s82, %s83
      %p94 = scmp.eq.s32.totalorder %s22, 0
      %p95 = por %p93, %p94
      %p96 = scmp.ne.s32.totalorder %s82, %s83
      %p97 = scmp.eq.s32.totalorder %s23, 1
      %p98 = por %p96, %p97
      %p100 = scmp.ne.s32.totalorder %s83, %s99
      %p101 = scmp.eq.s32.totalorder %s23, 0
      %p102 = por %p100, %p101
      %p103 = scmp.le.s32.totalorder 1, %s17
      %p104 = scmp.lt.s32.totalorder %s17, 3
      %p105 = pnand %p103, %p104
      %p106 = pneg %p105
      // Predicated region
      $region9: #{tpu_custom_call.1} parent=5 // pred_check
        _
      $region10: #{tpu_custom_call.1} parent=5 // pred_check_branch
        %108 = sbr.rel (%p105) target = $region12
      $region11: #{tpu_custom_call.1} parent=5 // pred_region
        %s109 = ssub.s32 %s17, 1
      $region12: #{tpu_custom_call.1} parent=5 // pred_fallthru
        _
      %p110 = scmp.lt.s32.totalorder %s17, 2
      // Predicated region
      $region13: #{tpu_custom_call.1} parent=5 // pred_check
        %p111 = pneg %p110
      $region14: #{tpu_custom_call.1} parent=5 // pred_check_branch
        %113 = sbr.rel (%p111) target = $region16
      $region15: #{tpu_custom_call.1} parent=5 // pred_region
        // Predicated region
        $region17: #{tpu_custom_call.1} parent=15 // pred_check
          %p114 = pneg %p37
        $region18: #{tpu_custom_call.1} parent=15 // pred_check_branch
          %116 = sbr.rel (%p114) target = $region20
        $region19: #{tpu_custom_call.1} parent=15 // pred_region
          %s117 = sand.u32 %s27, 1
          %s118 = scalar_lea.sflag [#allocation3], %s117
          %s119 = sand.u32 %s27, 1
          %s120 = smul.addr %s119, 16
          %s121 = scalar_lea.vmem [#allocation2], %s120
          %123 = vsyncadd %s118, 0
          %s124 = smul.addr %s17, 8
          %s125 = scalar_lea.hbm %s0, %s124
          %s126 = sshll.u32 %s125, 4
          %s127 = int_to_ptr.hbm [resolvable:$true] %s126
          %s128 = sshll.u32 %s121, 4
          %s129 = int_to_ptr.vmem [resolvable:$true] %s128
          %134 = dma.hbm_to_vmem [thread:$0]  %s127, 256, %s129, %s118, 256, 128, 8
        $region20: #{tpu_custom_call.1} parent=15 // pred_fallthru
          _
        // Predicated region
        $region21: #{tpu_custom_call.1} parent=15 // pred_check
          %p135 = pneg %p63
        $region22: #{tpu_custom_call.1} parent=15 // pred_check_branch
          %137 = sbr.rel (%p135) target = $region24
        $region23: #{tpu_custom_call.1} parent=15 // pred_region
          %s138 = sand.u32 %s53, 1
          %s139 = scalar_lea.sflag [#allocation6], %s138
          %s140 = sand.u32 %s53, 1
          %s141 = smul.addr %s140, 8
          %s142 = scalar_lea.vmem [#allocation5], %s141
          %144 = vsyncadd %s139, 0
          %s145 = smul.addr %s17, 8
          %s146 = scalar_lea.hbm %s1, %s145
          %s148 = sshll.u32 %s146, 4
          %s149 = int_to_ptr.hbm [resolvable:$true] %s148
          %s150 = sshll.u32 %s142, 4
          %s151 = int_to_ptr.vmem [resolvable:$true] %s150
          %153 = dma.hbm_to_vmem [thread:$0]  %s149, 128, %s151, %s139
        $region24: #{tpu_custom_call.1} parent=15 // pred_fallthru
          _
      $region16: #{tpu_custom_call.1} parent=5 // pred_fallthru
        _
      %p154 = scmp.le.s32.totalorder 1, %s17
      %p155 = scmp.lt.s32.totalorder %s17, 3
      %p156 = pnand %p154, %p155
      %p157 = pneg %p156
      // Predicated region
      $region25: #{tpu_custom_call.1} parent=5 // pred_check
        _
      $region26: #{tpu_custom_call.1} parent=5 // pred_check_branch
        %159 = sbr.rel (%p156) target = $region28
      $region27: #{tpu_custom_call.1} parent=5 // pred_region
        %s160 = ssub.s32 %s17, 1
        %s161 = sand.u32 %s30, 1
        %s162 = scalar_lea.sflag [#allocation3], %s161
        %s163 = sand.u32 %s30, 1
        %s164 = smul.addr %s163, 16
        %s165 = scalar_lea.vmem [#allocation2], %s164
        // Predicated region
        $region29: #{tpu_custom_call.1} parent=27 // pred_check
          %p166 = pneg %p43
        $region30: #{tpu_custom_call.1} parent=27 // pred_check_branch
          %168 = sbr.rel (%p166) target = $region32
        $region31: #{tpu_custom_call.1} parent=27 // pred_region
          %170 = dma.done %s162, 256
        $region32: #{tpu_custom_call.1} parent=27 // pred_fallthru
          _
        %s171 = sand.u32 %s56, 1
        %s172 = scalar_lea.sflag [#allocation6], %s171
        %s173 = sand.u32 %s56, 1
        %s174 = smul.addr %s173, 8
        %s175 = scalar_lea.vmem [#allocation5], %s174
        // Predicated region
        $region33: #{tpu_custom_call.1} parent=27 // pred_check
          %p176 = pneg %p69
        $region34: #{tpu_custom_call.1} parent=27 // pred_check_branch
          %178 = sbr.rel (%p176) target = $region36
        $region35: #{tpu_custom_call.1} parent=27 // pred_region
          %180 = dma.done %s172, 128
        $region36: #{tpu_custom_call.1} parent=27 // pred_fallthru
          _
        %s181 = sand.u32 %s30, 1
        %s182 = scalar_lea.sflag [#allocation3], %s181
        %s183 = sand.u32 %s30, 1
        %s184 = smul.addr %s183, 16
        %s185 = scalar_lea.vmem [#allocation2], %s184
        %p186 = pneg %p43
        %p187 = pneg %p40
        %s188 = sand.u32 %s56, 1
        %s189 = scalar_lea.sflag [#allocation6], %s188
        %s190 = sand.u32 %s56, 1
        %s191 = smul.addr %s190, 8
        %s192 = scalar_lea.vmem [#allocation5], %s191
        %p193 = pneg %p69
        %p194 = pneg %p66
        %p195 = pneg %p95
        %p196 = pneg %p92
        %s197 = sand.u32 %s82, 1
        %s198 = scalar_lea.sflag [#allocation4], %s197
        %s199 = sand.u32 %s82, 1
        %s200 = smul.addr %s199, 16
        %s201 = scalar_lea.vmem [#allocation7], %s200
        %v202 = vld [vmem:[%s165] sm:$0xff]
        %v203 = vld [vmem:[%s165 + $0x8] sm:$0xff]
        %v204 = vld [vmem:[%s175] sm:$0xff]
        %v205 = vadd.f32 %v202, %v204
        %v206 = vadd.f32 %v203, %v204
        %207 = vst [vmem:[%s201] sm:$0xff] %v205
        %208 = vst [vmem:[%s201 + $0x8] sm:$0xff] %v206
        %s209 = sand.u32 %s82, 1
        %s210 = scalar_lea.sflag [#allocation4], %s209
        %s211 = sand.u32 %s82, 1
        %s212 = smul.addr %s211, 16
        %s213 = scalar_lea.vmem [#allocation7], %s212
        // Predicated region
        $region37: #{tpu_custom_call.1} parent=27 // pred_check
          %p214 = pneg %p92
        $region38: #{tpu_custom_call.1} parent=27 // pred_check_branch
          %216 = sbr.rel (%p214) target = $region40
        $region39: #{tpu_custom_call.1} parent=27 // pred_region
          %218 = vsyncadd %s210, 0
          %s219 = smul.addr %s22, 8
          %s220 = scalar_lea.hbm %s2, %s219
          %s221 = sshll.u32 %s213, 4
          %s222 = int_to_ptr.vmem [resolvable:$true] %s221
          %s223 = sshll.u32 %s220, 4
          %s224 = int_to_ptr.hbm [resolvable:$true] %s223
          %229 = dma.vmem_to_hbm [thread:$0]  %s222, 256, %s224, %s210, 128, 256, 8
        $region40: #{tpu_custom_call.1} parent=27 // pred_fallthru
          _
      $region28: #{tpu_custom_call.1} parent=5 // pred_fallthru
        _
      %p230 = scmp.le.s32.totalorder 2, %s17
      // Predicated region
      $region41: #{tpu_custom_call.1} parent=5 // pred_check
        %p231 = pneg %p230
      $region42: #{tpu_custom_call.1} parent=5 // pred_check_branch
        %233 = sbr.rel (%p231) target = $region44
      $region43: #{tpu_custom_call.1} parent=5 // pred_region
        %s234 = ssub.s32 %s17, 2
        // Predicated region
        $region45: #{tpu_custom_call.1} parent=43 // pred_check
          %p235 = pneg %p98
        $region46: #{tpu_custom_call.1} parent=43 // pred_check_branch
          %237 = sbr.rel (%p235) target = $region48
        $region47: #{tpu_custom_call.1} parent=43 // pred_region
          %s238 = sand.u32 %s83, 1
          %s239 = scalar_lea.sflag [#allocation4], %s238
          %s240 = sand.u32 %s83, 1
          %s241 = smul.addr %s240, 16
          %s242 = scalar_lea.vmem [#allocation7], %s241
          %244 = dma.done %s239, 256
        $region48: #{tpu_custom_call.1} parent=43 // pred_fallthru
          _
      $region44: #{tpu_custom_call.1} parent=5 // pred_fallthru
        _
    $region6: #{tpu_custom_call.1} parent=1 // loop_footer
      %s21 = sadd.s32 1, %s17
    $region7: #{tpu_custom_call.1} parent=1 // loop_footer_branch
      %16 = sbr.rel target = $region3
    $region8: #{tpu_custom_call.1} parent=1 // loop_exit
      _
    %245 = vsyncpa [#allocation3], 1
    %s246 = scalar_lea.sflag [#allocation3], 1
    %247 = vsyncpa %s246, 1
    %248 = vsyncpa [#allocation6], 1
    %s249 = scalar_lea.sflag [#allocation6], 1
    %250 = vsyncpa %s249, 1
    %251 = vsyncpa [#allocation4], 1
    %s252 = scalar_lea.sflag [#allocation4], 1
    %253 = vsyncpa %s252, 1

</llo_original>
